<compile_context>
chip_gen: v7x
topology: tpu7x:2x2x1
jax: 0.10.0
libtpu: 0.0.40
codegen_flags: <defaults>
</compile_context>

<pallas_src>
import functools

import jax
import jax.numpy as jnp
from jax.experimental import pallas as pl
from jax.experimental.pallas import tpu as pltpu


# ----------------------------- kernels -------------------------------------


def _build_feat(v_ref, i_ref, dv, di, pack):
    """Rebuild the packed concat(v, i) tile inside VMEM (lane shuffles only)."""
    v_t = v_ref[...]
    i_t = i_ref[...]
    if pack == 1:
        return jnp.concatenate([v_t, i_t], axis=-1)
    parts = []
    for j in range(pack):
        parts.append(v_t[:, j * dv:(j + 1) * dv])
        parts.append(i_t[:, j * di:(j + 1) * di])
    return jnp.concatenate(parts, axis=-1)


def _soft_kernel(v_ref, i_ref, w_ref, b_ref, o_ref, *, dv, di, pack):
    # feat: (bm, pack*F); w_ref: block-diagonal kron(I_pack, W.T) (pack*F, pack*F)
    feat = _build_feat(v_ref, i_ref, dv, di, pack)
    wts = jnp.dot(feat, w_ref[...], preferred_element_type=jnp.float32) + b_ref[...]
    o_ref[...] = (feat.astype(jnp.float32) * wts).astype(o_ref.dtype)


def _hard_kernel(v_ref, i_ref, w_ref, b_ref, n_ref, o_ref, *, dv, di, pack):
    # d = feat @ (W0 - W1) + (b0 - b1) + logistic_noise ; keep feat where class 0 wins.
    feat = _build_feat(v_ref, i_ref, dv, di, pack)
    d = (jnp.dot(feat, w_ref[...], preferred_element_type=jnp.float32)
         + b_ref[...] + n_ref[...])
    # '>= 0' matches torch.argmax tie-breaking (first index, i.e. class 0).
    o_ref[...] = jnp.where(d >= 0.0, feat, jnp.zeros_like(feat)).astype(o_ref.dtype)


# ----------------------------- wrapper helpers ------------------------------


def _round_up(x, n):
    return (x + n - 1) // n * n


def _pack_factor(m, f):
    """Pack rows along lanes when F < 128 so loads/matmul/stores are lane-dense."""
    if f < 128 and 128 % f == 0 and m % (128 // f) == 0:
        return 128 // f
    return 1


def _block_rows(mp, desired_packed):
    """Packed-row tile: multiple of 8, capped so the grid keeps >= 2 steps (v7x: 2 TCs)."""
    desired = max(8, _round_up(desired_packed, 8))
    half = max(8, _round_up(pl.cdiv(mp, 2), 8))
    return min(desired, half)


# ----------------------------- wrappers ------------------------------------


def fusion_cat(v, i):
    return jnp.concatenate([v, i], axis=-1)


def hard_fusion_noise(key, shape, dtype=jnp.float32):
    """Noise for the hard path: Gumbel(0) - Gumbel(1) is Logistic -> one tensor."""
    return jax.random.logistic(key, shape, dtype)


@functools.partial(jax.jit, static_argnames=("block_rows",))
def fusion_soft(v, i, w_t, bias, *, block_rows=512):
    """w_t: (F, F) = torch_weight.T, bias: (F,)."""
    b, s, dv = v.shape
    di = i.shape[-1]
    f = dv + di
    m = b * s
    pack = _pack_factor(m, f)
    mp, fp = m // pack, pack * f

    vp = v.reshape(mp, pack * dv)                       # metadata-only reshapes
    ip = i.reshape(mp, pack * di)
    w_blk = jnp.kron(jnp.eye(pack, dtype=w_t.dtype), w_t)    # (fp, fp) block-diagonal
    b_blk = jnp.tile(bias, pack).reshape(1, fp)

    bm = _block_rows(mp, block_rows // pack)
    grid = (pl.cdiv(mp, bm),)

    out = pl.pallas_call(
        functools.partial(_soft_kernel, dv=dv, di=di, pack=pack),
        out_shape=jax.ShapeDtypeStruct((mp, fp), v.dtype),
        grid_spec=pltpu.PrefetchScalarGridSpec(
            num_scalar_prefetch=0,
            grid=grid,
            in_specs=[
                pl.BlockSpec((bm, pack * dv), lambda r: (r, 0)),
                pl.BlockSpec((bm, pack * di), lambda r: (r, 0)),
                pl.BlockSpec((fp, fp), lambda r: (0, 0)),
                pl.BlockSpec((1, fp), lambda r: (0, 0)),
            ],
            out_specs=pl.BlockSpec((bm, fp), lambda r: (r, 0)),
        ),
        compiler_params=pltpu.CompilerParams(dimension_semantics=("parallel",)),
    )(vp, ip, w_blk, b_blk)
    return out.reshape(b, s, f)


@functools.partial(jax.jit, static_argnames=("block_rows",))
def fusion_hard(v, i, w_t, bias, noise, *, block_rows=512):
    """w_t: (F, 2F) = torch_weight.T, bias: (2F,), noise: (B, S, F) logistic (= g0 - g1)."""
    b, s, dv = v.shape
    di = i.shape[-1]
    f = dv + di
    m = b * s
    pack = _pack_factor(m, f)
    mp, fp = m // pack, pack * f

    vp = v.reshape(mp, pack * dv)
    ip = i.reshape(mp, pack * di)
    # (F, 2) view of the Linear(F, 2F) output: column 2k -> class 0, 2k+1 -> class 1.
    w_diff = w_t[:, 0::2] - w_t[:, 1::2]                # (F, F)
    b_diff = bias[0::2] - bias[1::2]                    # (F,)
    w_blk = jnp.kron(jnp.eye(pack, dtype=w_diff.dtype), w_diff)
    b_blk = jnp.tile(b_diff, pack).reshape(1, fp)
    n_p = noise.reshape(mp, fp).astype(jnp.float32)

    bm = _block_rows(mp, block_rows // pack)
    grid = (pl.cdiv(mp, bm),)

    out = pl.pallas_call(
        functools.partial(_hard_kernel, dv=dv, di=di, pack=pack),
        out_shape=jax.ShapeDtypeStruct((mp, fp), v.dtype),
        grid_spec=pltpu.PrefetchScalarGridSpec(
            num_scalar_prefetch=0,
            grid=grid,
            in_specs=[
                pl.BlockSpec((bm, pack * dv), lambda r: (r, 0)),
                pl.BlockSpec((bm, pack * di), lambda r: (r, 0)),
                pl.BlockSpec((fp, fp), lambda r: (0, 0)),
                pl.BlockSpec((1, fp), lambda r: (0, 0)),
                pl.BlockSpec((bm, fp), lambda r: (r, 0)),
            ],
            out_specs=pl.BlockSpec((bm, fp), lambda r: (r, 0)),
        ),
        compiler_params=pltpu.CompilerParams(dimension_semantics=("parallel",)),
    )(vp, ip, w_blk, b_blk, n_p)
    return out.reshape(b, s, f)


# ----------------------------- demo / check ---------------------------------


if __name__ == "__main__":
    key = jax.random.PRNGKey(0)
    kv, ki, kw_s, kb_s, kw_h, kb_h, kg = jax.random.split(key, 7)

    B, S = 2, 24
    Dv, Di = 16, 16          # opt.v_f_len, opt.i_f_len
    F = Dv + Di              # self.f_len
    # M = 48 -> pack = 4, packed rows = 12, block = 8 -> grid of 2 with a ragged tail.

    v = jax.random.normal(kv, (B, S, Dv), dtype=jnp.float32)
    i = jax.random.normal(ki, (B, S, Di), dtype=jnp.float32)

    # Deterministic "Linear" parameters (stored pre-transposed: (in, out)).
    w_soft_t = jax.random.normal(kw_s, (F, F), dtype=jnp.float32) / jnp.sqrt(F)
    b_soft = jax.random.normal(kb_s, (F,), dtype=jnp.float32) * 0.01
    w_hard_t = jax.random.normal(kw_h, (F, 2 * F), dtype=jnp.float32) / jnp.sqrt(F)
    b_hard = jax.random.normal(kb_h, (2 * F,), dtype=jnp.float32) * 0.01

    feat_ref = jnp.concatenate([v, i], axis=-1)

    # --- 'cat' (glue only) ---
    out_cat = jax.block_until_ready(fusion_cat(v, i))
    assert out_cat.shape == (B, S, F)

    # --- 'soft' ---
    out_soft = jax.block_until_ready(fusion_soft(v, i, w_soft_t, b_soft))
    ref_soft = feat_ref * (feat_ref @ w_soft_t + b_soft)
    assert jnp.allclose(out_soft, ref_soft, atol=1e-4, rtol=1e-4)

    # --- 'hard' (gumbel noise sampled in glue; the kernel only needs g0 - g1) ---
    gumbel = jax.random.gumbel(kg, (B, S, F, 2), dtype=jnp.float32)
    noise = gumbel[..., 0] - gumbel[..., 1]   # in production: hard_fusion_noise(key, (B,S,F))
    out_hard = jax.block_until_ready(fusion_hard(v, i, w_hard_t, b_hard, noise))

    logits = (feat_ref @ w_hard_t + b_hard).reshape(B, S, F, 2) + gumbel
    d_ref = logits[..., 0] - logits[..., 1]
    ref_hard = feat_ref * (d_ref >= 0.0).astype(feat_ref.dtype)
    safe = jnp.abs(d_ref) > 1e-4              # ignore fp round-off at the decision boundary
    assert jnp.allclose(jnp.where(safe, out_hard, 0.0),
                        jnp.where(safe, ref_hard, 0.0), atol=1e-4, rtol=1e-4)

    print("KERNEL_OK")
</pallas_src>

<mosaic_0001>
module attributes {stable_mosaic.version = 11 : i64} {
  func.func @_soft_kernel(%arg0: i32, %arg1: memref<8x64xf32, #tpu.memory_space<vmem>>, %arg2: memref<8x64xf32, #tpu.memory_space<vmem>>, %arg3: memref<128x128xf32, #tpu.memory_space<vmem>>, %arg4: memref<1x128xf32, #tpu.memory_space<vmem>>, %arg5: memref<8x128xf32, #tpu.memory_space<vmem>>) attributes {dimension_semantics = [#tpu.dimension_semantics<parallel>], iteration_bounds = array<i64: 2>, scalar_prefetch = 0 : i64, scratch_operands = 0 : i64, tpu.core_type = #tpu.core_type<tc>, window_params = [{transform_indices = @transform_0, window_bounds = array<i64: 8, 64>}, {transform_indices = @transform_1, window_bounds = array<i64: 8, 64>}, {pipeline_mode = #tpu.pipeline_mode<synchronous>, transform_indices = @transform_2, window_bounds = array<i64: 128, 128>}, {pipeline_mode = #tpu.pipeline_mode<synchronous>, transform_indices = @transform_3, window_bounds = array<i64: 1, 128>}, {transform_indices = @transform_4, window_bounds = array<i64: 8, 128>}]} {
    %c0 = arith.constant 0 : index
    %c0_0 = arith.constant 0 : index
    %0 = vector.load %arg1[%c0, %c0_0] : memref<8x64xf32, #tpu.memory_space<vmem>>, vector<8x64xf32>
    %c0_1 = arith.constant 0 : index
    %c0_2 = arith.constant 0 : index
    %1 = vector.load %arg2[%c0_1, %c0_2] : memref<8x64xf32, #tpu.memory_space<vmem>>, vector<8x64xf32>
    %2 = vector.extract_strided_slice %0 {offsets = [0, 0], sizes = [8, 16], strides = [1, 1]} : vector<8x64xf32> to vector<8x16xf32>
    %3 = vector.extract_strided_slice %1 {offsets = [0, 0], sizes = [8, 16], strides = [1, 1]} : vector<8x64xf32> to vector<8x16xf32>
    %4 = vector.extract_strided_slice %0 {offsets = [0, 16], sizes = [8, 16], strides = [1, 1]} : vector<8x64xf32> to vector<8x16xf32>
    %5 = vector.extract_strided_slice %1 {offsets = [0, 16], sizes = [8, 16], strides = [1, 1]} : vector<8x64xf32> to vector<8x16xf32>
    %6 = vector.extract_strided_slice %0 {offsets = [0, 32], sizes = [8, 16], strides = [1, 1]} : vector<8x64xf32> to vector<8x16xf32>
    %7 = vector.extract_strided_slice %1 {offsets = [0, 32], sizes = [8, 16], strides = [1, 1]} : vector<8x64xf32> to vector<8x16xf32>
    %8 = vector.extract_strided_slice %0 {offsets = [0, 48], sizes = [8, 16], strides = [1, 1]} : vector<8x64xf32> to vector<8x16xf32>
    %9 = vector.extract_strided_slice %1 {offsets = [0, 48], sizes = [8, 16], strides = [1, 1]} : vector<8x64xf32> to vector<8x16xf32>
    %10 = tpu.concatenate %2, %3, %4, %5, %6, %7, %8, %9 in 1 : vector<8x16xf32>, vector<8x16xf32>, vector<8x16xf32>, vector<8x16xf32>, vector<8x16xf32>, vector<8x16xf32>, vector<8x16xf32>, vector<8x16xf32> -> vector<8x128xf32>
    %c0_3 = arith.constant 0 : index
    %c0_4 = arith.constant 0 : index
    %11 = vector.load %arg3[%c0_3, %c0_4] : memref<128x128xf32, #tpu.memory_space<vmem>>, vector<128x128xf32>
    %cst = arith.constant dense<0.000000e+00> : vector<8x128xf32>
    %12 = tpu.matmul %10, %11, %cst {dimension_numbers = #tpu.dot_dimension_numbers<[1], [0], [0], [1], [0, 0, 1, 1], [], []>} : vector<8x128xf32>, vector<128x128xf32>, vector<8x128xf32> -> vector<8x128xf32>
    %c0_5 = arith.constant 0 : index
    %c0_6 = arith.constant 0 : index
    %13 = vector.load %arg4[%c0_5, %c0_6] : memref<1x128xf32, #tpu.memory_space<vmem>>, vector<1x128xf32>
    %14 = vector.broadcast %13 : vector<1x128xf32> to vector<8x128xf32>
    %15 = arith.addf %12, %14 : vector<8x128xf32>
    %16 = arith.mulf %10, %15 : vector<8x128xf32>
    %c0_7 = arith.constant 0 : index
    %c0_8 = arith.constant 0 : index
    %17 = vector.load %arg5[%c0_7, %c0_8] : memref<8x128xf32, #tpu.memory_space<vmem>>, vector<8x128xf32>
    tpu.vector_store %arg5[%c0_7, %c0_8], %16 {strides = array<i32>} : memref<8x128xf32, #tpu.memory_space<vmem>>, vector<8x128xf32>,
    return
  }
  func.func @transform_0(%arg0: i32) -> (i32, i32) {
    %c0_i32 = arith.constant 0 : i32
    %c0_i32_0 = arith.constant 0 : i32
    return %arg0, %c0_i32 : i32, i32
  }
  func.func @transform_1(%arg0: i32) -> (i32, i32) {
    %c0_i32 = arith.constant 0 : i32
    %c0_i32_0 = arith.constant 0 : i32
    return %arg0, %c0_i32 : i32, i32
  }
  func.func @transform_2(%arg0: i32) -> (i32, i32) {
    %c0_i32 = arith.constant 0 : i32
    %c0_i32_0 = arith.constant 0 : i32
    %c0_i32_1 = arith.constant 0 : i32
    return %c0_i32, %c0_i32_0 : i32, i32
  }
  func.func @transform_3(%arg0: i32) -> (i32, i32) {
    %c0_i32 = arith.constant 0 : i32
    %c0_i32_0 = arith.constant 0 : i32
    %c0_i32_1 = arith.constant 0 : i32
    return %c0_i32, %c0_i32_0 : i32, i32
  }
  func.func @transform_4(%arg0: i32) -> (i32, i32) {
    %c0_i32 = arith.constant 0 : i32
    %c0_i32_0 = arith.constant 0 : i32
    return %arg0, %c0_i32 : i32, i32
  }
}

</mosaic_0001>

<llo_original>
// kernel: tile.8
$region0: #{tile.8}
  #allocation0 [shape = 's32[1]{0}', space=sflag, size = 0x4, scoped, tag = 'scoped memory for tile.8']
  %s0 = inlined_call_operand.vmem [shape: f32[32], index: 0, kind: input, shape index: {}]
  %s1 = inlined_call_operand.vmem [shape: f32[4,32], index: 1, kind: output, shape index: {}]
  // Predicated region
  $region2: #{tile.8} parent=0 // pred_check
    _
  $region3: #{tile.8} parent=0 // pred_check_branch
    %3 = sbr.rel (0) target = $region5
  $region4: #{tile.8} parent=0 // pred_region
    _
  $region5: #{tile.8} parent=0 // pred_fallthru
    _
  %v4 = vld [vmem:[%s0] ss:$0 sm:$0xff]
  %5 = vst [vmem:[%s1] sm:$0xf] %v4

// kernel: tile.9
$region0: #{tile.9}
  %s0 = inlined_call_operand.vmem [shape: f32[4,32], index: 0, kind: input, shape index: {}]
  %s1 = inlined_call_operand.vmem [shape: f32[1,128], index: 1, kind: output, shape index: {}]
  $region1: #{tile.9} parent=0
    #allocation0 [shape = 'u8[4096]{0}', space=vmem, size = 0x1000, scoped, tag = 'scoped mem for output reshape']
    #allocation1 [shape = 'u8[4096]{0}', space=vmem, size = 0x1000, scoped, tag = 'scoped mem for input reshape']
    %s3 = sshllo.u32 0, 4
    %v4 = vld [vmem:[%s0] sm:%s3]
    %5 = vst [vmem:[#allocation1] sm:%s3] %v4
    %v6 = vld [vmem:[#allocation1] sm:$0x1]
    %vm7 = vcmask 261120
    %8 = vst.msk [vmem:[#allocation0] sm:$0x1] %vm7, %v6
    %s9 = scalar_lea.vmem [#allocation1], 3
    %v10 = vld [vmem:[%s9] sm:$0x1]
    %11 = vrot.lane.b32.xlu0 %v10, 96
    %v12 = vpop.permute.xlu0 %11
    %vm13 = vcmask 1048320
    %14 = vst.msk [vmem:[#allocation0] sm:$0x1] %vm13, %v12
    %s15 = scalar_lea.vmem [#allocation1], 2
    %v16 = vld [vmem:[%s15] sm:$0x1]
    %17 = vrot.lane.b32.xlu0 %v16, 64
    %v18 = vpop.permute.xlu0 %17
    %vm19 = vcmask 785920
    %20 = vst.msk [vmem:[#allocation0] sm:$0x1] %vm19, %v18
    %s21 = scalar_lea.vmem [#allocation1], 1
    %v22 = vld [vmem:[%s21] sm:$0x1]
    %23 = vrot.lane.b32.xlu0 %v22, 32
    %v24 = vpop.permute.xlu0 %23
    %vm25 = vcmask 523520
    %26 = vst.msk [vmem:[#allocation0] sm:$0x1] %vm25, %v24
    %s28 = sshllo.u32 0, 1
    %v30 = vld [vmem:[#allocation0] sm:%s28]
    %s31 = sshllo.u32 0, 1
    %32 = vst [vmem:[%s1] sm:%s31] %v30

</llo_original>
